<compile_context>
chip_gen: v7x
topology: tpu7x:2x2x1
jax: 0.10.0
libtpu: 0.0.40
codegen_flags: <defaults>
</compile_context>

<pallas_src>
import jax
import jax.numpy as jnp
from jax.experimental import pallas as pl
from jax.experimental.pallas import tpu as pltpu


def _softmax_last(z):
    """Numerically stable softmax over the last axis, f32, EUP reciprocal."""
    zmax = jnp.max(z, axis=-1, keepdims=True)
    e = jnp.exp(z - zmax)
    denom = jnp.sum(e, axis=-1, keepdims=True)
    return e * pl.reciprocal(denom, approx=True)


def _lambda_kernel(x_ref, a_ref, s_tile_ref, s_full_ref,
                   out_x_ref, out_adj_ref, acc_x, acc_sa):
    # grid = (batch_blocks, node_tiles); node tiles (reduction) are the last axis.
    k = pl.program_id(1)
    nk = pl.num_programs(1)

    @pl.when(k == 0)
    def _init():
        acc_x[...] = jnp.zeros_like(acc_x)
        acc_sa[...] = jnp.zeros_like(acc_sa)

    # f32 softmax over the cluster axis for this node tile.
    s_soft = _softmax_last(s_tile_ref[...])                   # (bt, tn, C) f32
    # Materialize the transposed assignment once and reuse for both matmuls.
    s_t = jnp.swapaxes(s_soft, 1, 2).astype(jnp.bfloat16)     # (bt, C, tn) bf16

    x = x_ref[...]                                             # (bt, tn, F) bf16
    a = a_ref[...]                                             # (bt, tn, N) bf16

    # acc_x  += s_soft^T @ x        (partial over this node tile)
    # acc_sa += s_soft^T @ a        (partial over this node tile)
    acc_x[...] += jnp.einsum('bcn,bnf->bcf', s_t, x,
                             preferred_element_type=jnp.float32)
    acc_sa[...] += jnp.einsum('bcn,bnm->bcm', s_t, a,
                              preferred_element_type=jnp.float32)

    @pl.when(k == nk - 1)
    def _finalize():
        # Small (C,N)@(N,C) per batch block, done once, kept in f32 for accuracy.
        s_soft_full = _softmax_last(s_full_ref[...])           # (bt, N, C) f32
        out_x_ref[...] = acc_x[...].astype(out_x_ref.dtype)
        out_adj_ref[...] = jnp.einsum(
            'bcm,bmk->bck', acc_sa[...], s_soft_full,
            preferred_element_type=jnp.float32).astype(out_adj_ref.dtype)


def _pick_node_tile(n, target=512):
    """Largest divisor of n <= target, preferring MXU-friendly alignments."""
    if n <= target:
        return n
    for align in (256, 128, 8):
        start = target - (target % align)
        for t in range(start, 0, -align):
            if n % t == 0:
                return t
    return n  # no nicely aligned divisor: fall back to the full axis


def _pick_batch_tile(b, tn, n, budget_bytes=4 * 1024 * 1024):
    """Fuse as many batch elements as fit a modest VMEM budget (adjacency tile)."""
    bt = 1
    for cand in range(1, min(b, 32) + 1):
        if b % cand == 0 and cand * tn * n * 2 <= budget_bytes:
            bt = cand
    return bt


def lambda_layer(x, a, s):
    """Pallas implementation of LambdaLayer(lambd)(x, a, s) for the
    dense soft-assignment pooling lambda described above."""
    B, N, F = x.shape
    _, _, C = s.shape
    assert a.shape == (B, N, N)
    assert s.shape == (B, N, C)

    tn = _pick_node_tile(N)
    bt = _pick_batch_tile(B, tn, N)
    nb = B // bt
    nk = N // tn

    # bf16 MXU operands; the (N,N) adjacency dominates HBM traffic, so this
    # roughly halves the memory-bound roofline. Softmax input stays f32.
    x_bf = x.astype(jnp.bfloat16)
    a_bf = a.astype(jnp.bfloat16)
    s_f32 = s.astype(jnp.float32)

    # Rough VMEM footprint: double-buffered input blocks + resident full-s block
    # + output blocks + f32 accumulators. Used to size the scoped VMEM limit.
    est = (2 * bt * tn * (2 * F + 2 * N + 4 * C)   # x/a bf16, s-tile f32 (x2 buf)
           + 2 * bt * N * C * 4                    # full-s block
           + 2 * bt * C * (F + C) * 4              # outputs
           + bt * C * (F + N) * 4)                 # accumulators
    vmem_limit = int(min(max(1.5 * est, 32 * 1024 * 1024), 64 * 1024 * 1024))

    return pl.pallas_call(
        _lambda_kernel,
        out_shape=(
            jax.ShapeDtypeStruct((B, C, F), jnp.float32),
            jax.ShapeDtypeStruct((B, C, C), jnp.float32),
        ),
        grid_spec=pltpu.PrefetchScalarGridSpec(
            num_scalar_prefetch=0,
            grid=(nb, nk),
            in_specs=[
                pl.BlockSpec((bt, tn, F), lambda b, k: (b, k, 0)),  # x tile (bf16)
                pl.BlockSpec((bt, tn, N), lambda b, k: (b, k, 0)),  # adjacency row-tile (bf16)
                pl.BlockSpec((bt, tn, C), lambda b, k: (b, k, 0)),  # s tile (f32)
                pl.BlockSpec((bt, N, C), lambda b, k: (b, 0, 0)),   # full s (resident, f32)
            ],
            out_specs=[
                pl.BlockSpec((bt, C, F), lambda b, k: (b, 0, 0)),
                pl.BlockSpec((bt, C, C), lambda b, k: (b, 0, 0)),
            ],
            scratch_shapes=[
                pltpu.VMEM((bt, C, F), jnp.float32),   # acc_x
                pltpu.VMEM((bt, C, N), jnp.float32),   # acc_sa = s^T a (partial)
            ],
        ),
        compiler_params=pltpu.CompilerParams(
            dimension_semantics=("parallel", "arbitrary"),
            vmem_limit_bytes=vmem_limit,
        ),
    )(x_bf, a_bf, s_f32, s_f32)


def lambda_layer_ref(x, a, s):
    """Pure-JAX reference of the same lambda, for correctness checking."""
    s_soft = jax.nn.softmax(s, axis=-1)
    out_x = jnp.einsum('bnc,bnf->bcf', s_soft, x)
    out_adj = jnp.einsum('bnc,bnm,bmk->bck', s_soft, a, s_soft)
    return out_x, out_adj


if __name__ == "__main__":
    # Small deterministic inputs consistent with the (x, adj, s) signature.
    B, N, F, C = 2, 16, 32, 8
    key = jax.random.PRNGKey(0)
    kx, ka, ks = jax.random.split(key, 3)

    x = jax.random.normal(kx, (B, N, F), dtype=jnp.float32)
    # symmetric non-negative adjacency, like a dense GNN adjacency matrix
    a_raw = jax.random.uniform(ka, (B, N, N), dtype=jnp.float32)
    a = 0.5 * (a_raw + jnp.transpose(a_raw, (0, 2, 1)))
    s = jax.random.normal(ks, (B, N, C), dtype=jnp.float32)

    out_x, out_adj = lambda_layer(x, a, s)
    out_x = jax.block_until_ready(out_x)
    out_adj = jax.block_until_ready(out_adj)

    ref_x, ref_adj = lambda_layer_ref(x, a, s)
    # bf16 MXU operands -> slightly looser tolerance than the pure-f32 version.
    assert jnp.allclose(out_x, ref_x, atol=3e-2, rtol=3e-2)
    assert jnp.allclose(out_adj, ref_adj, atol=3e-2, rtol=3e-2)

    print("KERNEL_OK")
</pallas_src>

<mosaic_0001>
module attributes {stable_mosaic.version = 11 : i64} {
  func.func @_lambda_kernel(%arg0: i32, %arg1: i32, %arg2: memref<2x16x32xbf16, #tpu.memory_space<vmem>>, %arg3: memref<2x16x16xbf16, #tpu.memory_space<vmem>>, %arg4: memref<2x16x8xf32, #tpu.memory_space<vmem>>, %arg5: memref<2x16x8xf32, #tpu.memory_space<vmem>>, %arg6: memref<2x8x32xf32, #tpu.memory_space<vmem>>, %arg7: memref<2x8x8xf32, #tpu.memory_space<vmem>>, %arg8: memref<2x8x32xf32, #tpu.memory_space<vmem>>, %arg9: memref<2x8x16xf32, #tpu.memory_space<vmem>>) attributes {dimension_semantics = [#tpu.dimension_semantics<parallel>, #tpu.dimension_semantics<arbitrary>], iteration_bounds = array<i64: 1, 1>, scalar_prefetch = 0 : i64, scratch_operands = 2 : i64, tpu.core_type = #tpu.core_type<tc>, window_params = [{transform_indices = @transform_0, window_bounds = array<i64: 2, 16, 32>}, {transform_indices = @transform_1, window_bounds = array<i64: 2, 16, 16>}, {transform_indices = @transform_2, window_bounds = array<i64: 2, 16, 8>}, {transform_indices = @transform_3, window_bounds = array<i64: 2, 16, 8>}, {transform_indices = @transform_4, window_bounds = array<i64: 2, 8, 32>}, {transform_indices = @transform_5, window_bounds = array<i64: 2, 8, 8>}]} {
    %c0_i32 = arith.constant 0 : i32
    %0 = arith.cmpi eq, %arg1, %c0_i32 : i32
    %1 = arith.extui %0 : i1 to i32
    %c0_i32_0 = arith.constant 0 : i32
    %2 = arith.cmpi ne, %1, %c0_i32_0 : i32
    scf.if %2 {
      %cst_26 = arith.constant 0.000000e+00 : f32
      %29 = vector.broadcast %cst_26 : f32 to vector<2x8x32xf32>
      %c0_27 = arith.constant 0 : index
      %c0_28 = arith.constant 0 : index
      %c0_29 = arith.constant 0 : index
      %30 = vector.load %arg8[%c0_27, %c0_28, %c0_29] : memref<2x8x32xf32, #tpu.memory_space<vmem>>, vector<2x8x32xf32>
      tpu.vector_store %arg8[%c0_27, %c0_28, %c0_29], %29 {strides = array<i32>} : memref<2x8x32xf32, #tpu.memory_space<vmem>>, vector<2x8x32xf32>,
      %cst_30 = arith.constant 0.000000e+00 : f32
      %31 = vector.broadcast %cst_30 : f32 to vector<2x8x16xf32>
      %c0_31 = arith.constant 0 : index
      %c0_32 = arith.constant 0 : index
      %c0_33 = arith.constant 0 : index
      %32 = vector.load %arg9[%c0_31, %c0_32, %c0_33] : memref<2x8x16xf32, #tpu.memory_space<vmem>>, vector<2x8x16xf32>
      tpu.vector_store %arg9[%c0_31, %c0_32, %c0_33], %31 {strides = array<i32>} : memref<2x8x16xf32, #tpu.memory_space<vmem>>, vector<2x8x16xf32>,
    } else {
    }
    %c0 = arith.constant 0 : index
    %c0_1 = arith.constant 0 : index
    %c0_2 = arith.constant 0 : index
    %3 = vector.load %arg4[%c0, %c0_1, %c0_2] : memref<2x16x8xf32, #tpu.memory_space<vmem>>, vector<2x16x8xf32>
    %cst = arith.constant dense<0xFF800000> : vector<2x16xf32>
    %4 = vector.multi_reduction <maximumf>, %3, %cst [2] : vector<2x16x8xf32> to vector<2x16xf32>
    %5 = vector.shape_cast %4 : vector<2x16xf32> to vector<2x16x1xf32>
    %6 = vector.broadcast %5 : vector<2x16x1xf32> to vector<2x16x8xf32>
    %7 = arith.subf %3, %6 : vector<2x16x8xf32>
    %8 = math.exp %7 : vector<2x16x8xf32>
    %cst_3 = arith.constant dense<0.000000e+00> : vector<2x16xf32>
    %9 = vector.multi_reduction <add>, %8, %cst_3 [2] : vector<2x16x8xf32> to vector<2x16xf32>
    %10 = vector.shape_cast %9 : vector<2x16xf32> to vector<2x16x1xf32>
    %11 = tpu.reciprocal %10 {approx = true} : vector<2x16x1xf32> -> vector<2x16x1xf32>
    %12 = vector.broadcast %11 : vector<2x16x1xf32> to vector<2x16x8xf32>
    %13 = arith.mulf %8, %12 : vector<2x16x8xf32>
    %14 = tpu.transpose %13, [0, 2, 1] : vector<2x16x8xf32> -> vector<2x8x16xf32>
    %15 = arith.truncf %14 : vector<2x8x16xf32> to vector<2x8x16xbf16>
    %c0_4 = arith.constant 0 : index
    %c0_5 = arith.constant 0 : index
    %c0_6 = arith.constant 0 : index
    %16 = vector.load %arg2[%c0_4, %c0_5, %c0_6] : memref<2x16x32xbf16, #tpu.memory_space<vmem>>, vector<2x16x32xbf16>
    %c0_7 = arith.constant 0 : index
    %c0_8 = arith.constant 0 : index
    %c0_9 = arith.constant 0 : index
    %17 = vector.load %arg3[%c0_7, %c0_8, %c0_9] : memref<2x16x16xbf16, #tpu.memory_space<vmem>>, vector<2x16x16xbf16>
    %c0_10 = arith.constant 0 : index
    %c0_11 = arith.constant 0 : index
    %c0_12 = arith.constant 0 : index
    %18 = vector.load %arg8[%c0_10, %c0_11, %c0_12] : memref<2x8x32xf32, #tpu.memory_space<vmem>>, vector<2x8x32xf32>
    "tpu.trace_start"() <{level = 10 : i32, message = "bcn,bnf->bcf"}> : () -> ()
    %cst_13 = arith.constant dense<0.000000e+00> : vector<2x8x32xf32>
    %19 = tpu.matmul %15, %16, %cst_13 {dimension_numbers = #tpu.dot_dimension_numbers<[2], [1], [1], [2], [0, 0, 0, 1, 1, 2], [0], [0]>} : vector<2x8x16xbf16>, vector<2x16x32xbf16>, vector<2x8x32xf32> -> vector<2x8x32xf32>
    "tpu.trace_stop"() : () -> ()
    %20 = arith.addf %18, %19 : vector<2x8x32xf32>
    %c0_14 = arith.constant 0 : index
    %c0_15 = arith.constant 0 : index
    %c0_16 = arith.constant 0 : index
    %21 = vector.load %arg8[%c0_14, %c0_15, %c0_16] : memref<2x8x32xf32, #tpu.memory_space<vmem>>, vector<2x8x32xf32>
    tpu.vector_store %arg8[%c0_14, %c0_15, %c0_16], %20 {strides = array<i32>} : memref<2x8x32xf32, #tpu.memory_space<vmem>>, vector<2x8x32xf32>,
    %c0_17 = arith.constant 0 : index
    %c0_18 = arith.constant 0 : index
    %c0_19 = arith.constant 0 : index
    %22 = vector.load %arg9[%c0_17, %c0_18, %c0_19] : memref<2x8x16xf32, #tpu.memory_space<vmem>>, vector<2x8x16xf32>
    "tpu.trace_start"() <{level = 10 : i32, message = "bcn,bnm->bcm"}> : () -> ()
    %cst_20 = arith.constant dense<0.000000e+00> : vector<2x8x16xf32>
    %23 = tpu.matmul %15, %17, %cst_20 {dimension_numbers = #tpu.dot_dimension_numbers<[2], [1], [1], [2], [0, 0, 0, 1, 1, 2], [0], [0]>} : vector<2x8x16xbf16>, vector<2x16x16xbf16>, vector<2x8x16xf32> -> vector<2x8x16xf32>
    "tpu.trace_stop"() : () -> ()
    %24 = arith.addf %22, %23 : vector<2x8x16xf32>
    %c0_21 = arith.constant 0 : index
    %c0_22 = arith.constant 0 : index
    %c0_23 = arith.constant 0 : index
    %25 = vector.load %arg9[%c0_21, %c0_22, %c0_23] : memref<2x8x16xf32, #tpu.memory_space<vmem>>, vector<2x8x16xf32>
    tpu.vector_store %arg9[%c0_21, %c0_22, %c0_23], %24 {strides = array<i32>} : memref<2x8x16xf32, #tpu.memory_space<vmem>>, vector<2x8x16xf32>,
    %c0_i32_24 = arith.constant 0 : i32
    %26 = arith.cmpi eq, %arg1, %c0_i32_24 : i32
    %27 = arith.extui %26 : i1 to i32
    %c0_i32_25 = arith.constant 0 : i32
    %28 = arith.cmpi ne, %27, %c0_i32_25 : i32
    scf.if %28 {
      %c0_26 = arith.constant 0 : index
      %c0_27 = arith.constant 0 : index
      %c0_28 = arith.constant 0 : index
      %29 = vector.load %arg5[%c0_26, %c0_27, %c0_28] : memref<2x16x8xf32, #tpu.memory_space<vmem>>, vector<2x16x8xf32>
      %cst_29 = arith.constant dense<0xFF800000> : vector<2x16xf32>
      %30 = vector.multi_reduction <maximumf>, %29, %cst_29 [2] : vector<2x16x8xf32> to vector<2x16xf32>
      %31 = vector.shape_cast %30 : vector<2x16xf32> to vector<2x16x1xf32>
      %32 = vector.broadcast %31 : vector<2x16x1xf32> to vector<2x16x8xf32>
      %33 = arith.subf %29, %32 : vector<2x16x8xf32>
      %34 = math.exp %33 : vector<2x16x8xf32>
      %cst_30 = arith.constant dense<0.000000e+00> : vector<2x16xf32>
      %35 = vector.multi_reduction <add>, %34, %cst_30 [2] : vector<2x16x8xf32> to vector<2x16xf32>
      %36 = vector.shape_cast %35 : vector<2x16xf32> to vector<2x16x1xf32>
      %37 = tpu.reciprocal %36 {approx = true} : vector<2x16x1xf32> -> vector<2x16x1xf32>
      %38 = vector.broadcast %37 : vector<2x16x1xf32> to vector<2x16x8xf32>
      %39 = arith.mulf %34, %38 : vector<2x16x8xf32>
      %c0_31 = arith.constant 0 : index
      %c0_32 = arith.constant 0 : index
      %c0_33 = arith.constant 0 : index
      %40 = vector.load %arg8[%c0_31, %c0_32, %c0_33] : memref<2x8x32xf32, #tpu.memory_space<vmem>>, vector<2x8x32xf32>
      %c0_34 = arith.constant 0 : index
      %c0_35 = arith.constant 0 : index
      %c0_36 = arith.constant 0 : index
      %41 = vector.load %arg6[%c0_34, %c0_35, %c0_36] : memref<2x8x32xf32, #tpu.memory_space<vmem>>, vector<2x8x32xf32>
      tpu.vector_store %arg6[%c0_34, %c0_35, %c0_36], %40 {strides = array<i32>} : memref<2x8x32xf32, #tpu.memory_space<vmem>>, vector<2x8x32xf32>,
      %c0_37 = arith.constant 0 : index
      %c0_38 = arith.constant 0 : index
      %c0_39 = arith.constant 0 : index
      %42 = vector.load %arg9[%c0_37, %c0_38, %c0_39] : memref<2x8x16xf32, #tpu.memory_space<vmem>>, vector<2x8x16xf32>
      "tpu.trace_start"() <{level = 10 : i32, message = "bcm,bmk->bck"}> : () -> ()
      %cst_40 = arith.constant dense<0.000000e+00> : vector<2x8x8xf32>
      %43 = tpu.matmul %42, %39, %cst_40 {dimension_numbers = #tpu.dot_dimension_numbers<[2], [1], [1], [2], [0, 0, 0, 1, 1, 2], [0], [0]>} : vector<2x8x16xf32>, vector<2x16x8xf32>, vector<2x8x8xf32> -> vector<2x8x8xf32>
      "tpu.trace_stop"() : () -> ()
      %c0_41 = arith.constant 0 : index
      %c0_42 = arith.constant 0 : index
      %c0_43 = arith.constant 0 : index
      %44 = vector.load %arg7[%c0_41, %c0_42, %c0_43] : memref<2x8x8xf32, #tpu.memory_space<vmem>>, vector<2x8x8xf32>
      tpu.vector_store %arg7[%c0_41, %c0_42, %c0_43], %43 {strides = array<i32>} : memref<2x8x8xf32, #tpu.memory_space<vmem>>, vector<2x8x8xf32>,
    } else {
    }
    return
  }
  func.func @transform_0(%arg0: i32, %arg1: i32) -> (i32, i32, i32) {
    %c0_i32 = arith.constant 0 : i32
    %c0_i32_0 = arith.constant 0 : i32
    return %arg0, %arg1, %c0_i32 : i32, i32, i32
  }
  func.func @transform_1(%arg0: i32, %arg1: i32) -> (i32, i32, i32) {
    %c0_i32 = arith.constant 0 : i32
    %c0_i32_0 = arith.constant 0 : i32
    return %arg0, %arg1, %c0_i32 : i32, i32, i32
  }
  func.func @transform_2(%arg0: i32, %arg1: i32) -> (i32, i32, i32) {
    %c0_i32 = arith.constant 0 : i32
    %c0_i32_0 = arith.constant 0 : i32
    return %arg0, %arg1, %c0_i32 : i32, i32, i32
  }
  func.func @transform_3(%arg0: i32, %arg1: i32) -> (i32, i32, i32) {
    %c0_i32 = arith.constant 0 : i32
    %c0_i32_0 = arith.constant 0 : i32
    %c0_i32_1 = arith.constant 0 : i32
    return %arg0, %c0_i32, %c0_i32_0 : i32, i32, i32
  }
  func.func @transform_4(%arg0: i32, %arg1: i32) -> (i32, i32, i32) {
    %c0_i32 = arith.constant 0 : i32
    %c0_i32_0 = arith.constant 0 : i32
    %c0_i32_1 = arith.constant 0 : i32
    return %arg0, %c0_i32, %c0_i32_0 : i32, i32, i32
  }
  func.func @transform_5(%arg0: i32, %arg1: i32) -> (i32, i32, i32) {
    %c0_i32 = arith.constant 0 : i32
    %c0_i32_0 = arith.constant 0 : i32
    %c0_i32_1 = arith.constant 0 : i32
    return %arg0, %c0_i32, %c0_i32_0 : i32, i32, i32
  }
}

</mosaic_0001>

<llo_original>
// kernel: tpu_custom_call.1
$region0: #{tpu_custom_call.1}
  #allocation0 [shape = 'u32[]', space=smem, size = 0x4, offset = 0x4, fixed_abs, tag = 'smem constant byte address 0x4 - core index']
  #allocation1 [shape = 'u32[144,128]{1,0:T(1,128)}', space=vmem, size = 0x12000, scoped, tag = 'internal scratch']
  #allocation2 [shape = 'f32[2,8,32]{2,1,0:T(8,128)}', space=vmem, size = 0x2000, scoped, tag = 'scratch operand']
  #allocation3 [shape = 'f32[2,8,16]{2,1,0:T(8,128)}', space=vmem, size = 0x2000, scoped, tag = 'scratch operand']
  %s0 = inlined_call_operand.vmem [shape: bf16[2,16,32], index: 0, kind: input, shape index: {}]
  %s1 = inlined_call_operand.vmem [shape: bf16[2,16,16], index: 1, kind: input, shape index: {}]
  %s2 = inlined_call_operand.vmem [shape: f32[2,16,8], index: 2, kind: input, shape index: {}]
  %s3 = inlined_call_operand.vmem [shape: f32[2,16,8], index: 3, kind: input, shape index: {}]
  %s4 = inlined_call_operand.hbm [shape: f32[2,8,32], index: 4, kind: output, shape index: {0}]
  %s5 = inlined_call_operand.hbm [shape: f32[2,8,8], index: 5, kind: output, shape index: {1}]
  %6 = xla_tuple %s4, %s5
  %s7 = sld [smem:[#allocation0]]
  $region42: #{tpu_custom_call.1} parent=0
    _
  %s9 = ssub.s32 1, %s7
  %s10 = scalar_select 0, %s9, %s7
  $region1: #{tpu_custom_call.1} parent=0
    #allocation4 [shape = 'u8[8192]{0}', space=vmem, size = 0x2000, scoped, tag = 'output window, operand 0, single buffered']
    #allocation5 [shape = 's32[1]{0}', space=sflag, size = 0x4, scoped, tag = 'scoped memory for tpu_custom_call.1']
    #allocation6 [shape = 'u8[8192]{0}', space=vmem, size = 0x2000, scoped, tag = 'output window, operand 1, single buffered']
    #allocation7 [shape = 's32[1]{0}', space=sflag, size = 0x4, scoped, tag = 'scoped memory for tpu_custom_call.1']
    %11 = vsyncpa [#allocation5], 0
    %12 = vsyncpa [#allocation7], 0
    // Predicated region
    $region2: #{tpu_custom_call.1} parent=1 // pred_check
      _
    $region3: #{tpu_custom_call.1} parent=1 // pred_check_branch
      %14 = sbr.rel (0) target = $region5
    $region4: #{tpu_custom_call.1} parent=1 // pred_region
      _
    $region5: #{tpu_custom_call.1} parent=1 // pred_fallthru
      _
    // Predicated region
    $region6: #{tpu_custom_call.1} parent=1 // pred_check
      _
    $region7: #{tpu_custom_call.1} parent=1 // pred_check_branch
      %16 = sbr.rel (0) target = $region9
    $region8: #{tpu_custom_call.1} parent=1 // pred_region
      _
    $region9: #{tpu_custom_call.1} parent=1 // pred_fallthru
      _
    // Predicated region
    $region10: #{tpu_custom_call.1} parent=1 // pred_check
      _
    $region11: #{tpu_custom_call.1} parent=1 // pred_check_branch
      %18 = sbr.rel (0) target = $region13
    $region12: #{tpu_custom_call.1} parent=1 // pred_region
      _
    $region13: #{tpu_custom_call.1} parent=1 // pred_fallthru
      _
    // Predicated region
    $region14: #{tpu_custom_call.1} parent=1 // pred_check
      _
    $region15: #{tpu_custom_call.1} parent=1 // pred_check_branch
      %20 = sbr.rel (0) target = $region17
    $region16: #{tpu_custom_call.1} parent=1 // pred_region
      _
    $region17: #{tpu_custom_call.1} parent=1 // pred_fallthru
      _
    %p22 = scmp.eq.s32.totalorder 0, 0
    // Predicated region
    $region18: #{tpu_custom_call.1} parent=1 // pred_check
      %p23 = pneg %p22
    $region19: #{tpu_custom_call.1} parent=1 // pred_check_branch
      %25 = sbr.rel (%p23) target = $region21
    $region20: #{tpu_custom_call.1} parent=1 // pred_region
      %vm26 = vcmask 261120
      %27 = vst.msk [vmem:[#allocation2] sm:$0xff] %vm26, 0.0
      %28 = vst.msk [vmem:[#allocation2 + $0x8] sm:$0xff] %vm26, 0.0
      %vm29 = vcmask 130048
      %30 = vst.msk [vmem:[#allocation3] sm:$0xff] %vm29, 0.0
      %31 = vst.msk [vmem:[#allocation3 + $0x8] sm:$0xff] %vm29, 0.0
    $region21: #{tpu_custom_call.1} parent=1 // pred_fallthru
      _
    %v32 = vld [vmem:[%s2] sm:$0xff]
    %v33 = vld [vmem:[%s2 + $0x8] sm:$0xff]
    %v34 = vld [vmem:[%s2 + $0x10] sm:$0xff]
    %v35 = vld [vmem:[%s2 + $0x18] sm:$0xff]
    %vm36 = vcmask 64512
    %v37 = vsel %vm36, %v32, -inf
    %38 = vmax.xlane.f32.xlu0 %v37
    %v39 = vpop.xlane.xlu0 %38
    %v40 = vsel %vm36, %v33, -inf
    %41 = vmax.xlane.f32.xlu0 %v40
    %v42 = vpop.xlane.xlu0 %41
    %v43 = vsel %vm36, %v34, -inf
    %44 = vmax.xlane.f32.xlu0 %v43
    %v45 = vpop.xlane.xlu0 %44
    %v46 = vsel %vm36, %v35, -inf
    %47 = vmax.xlane.f32.xlu0 %v46
    %v48 = vpop.xlane.xlu0 %47
    %v49 = vsub.f32 %v32, %v39
    %v50 = vsub.f32 %v33, %v42
    %v51 = vsub.f32 %v34, %v45
    %v52 = vsub.f32 %v35, %v48
    %v53 = vmul.f32 %v49, 1.442695
    %v54 = vpow.pop %v53
    %v55 = vmul.f32 %v50, 1.442695
    %v56 = vpow.pop %v55
    %v57 = vmul.f32 %v51, 1.442695
    %v58 = vpow.pop %v57
    %v59 = vmul.f32 %v52, 1.442695
    %v60 = vpow.pop %v59
    %v61 = vsel %vm36, %v54, 0.0
    %62 = vadd.xlane.f32.xlu0 %v61
    %v63 = vpop.xlane.xlu0 %62
    %v64 = vsel %vm36, %v56, 0.0
    %65 = vadd.xlane.f32.xlu0 %v64
    %v66 = vpop.xlane.xlu0 %65
    %v67 = vsel %vm36, %v58, 0.0
    %68 = vadd.xlane.f32.xlu0 %v67
    %v69 = vpop.xlane.xlu0 %68
    %v70 = vsel %vm36, %v60, 0.0
    %71 = vadd.xlane.f32.xlu0 %v70
    %v72 = vpop.xlane.xlu0 %71
    %v73 = vrcp.pop %v63
    %v74 = vrcp.pop %v66
    %v75 = vrcp.pop %v69
    %v76 = vrcp.pop %v72
    %v77 = vmul.f32 %v54, %v73
    %v78 = vmul.f32 %v56, %v74
    %v79 = vmul.f32 %v58, %v75
    %v80 = vmul.f32 %v60, %v76
    %81 = vxpose.xlu0.b32.start [1/16] %v77, 128
    %82 = vxpose.xlu0.b32.cont [2/16] %v78, 128
    %83 = vxpose.xlu0.b32.cont [3/16] 0.0, 128
    %84 = vxpose.xlu0.b32.cont [4/16] 0.0, 128
    %85 = vxpose.xlu0.b32.cont [5/16] 0.0, 128
    %86 = vxpose.xlu0.b32.cont [6/16] 0.0, 128
    %87 = vxpose.xlu0.b32.cont [7/16] 0.0, 128
    %88 = vxpose.xlu0.b32.cont [8/16] 0.0, 128
    %89 = vxpose.xlu0.b32.cont [9/16] 0.0, 128
    %90 = vxpose.xlu0.b32.cont [10/16] 0.0, 128
    %91 = vxpose.xlu0.b32.cont [11/16] 0.0, 128
    %92 = vxpose.xlu0.b32.cont [12/16] 0.0, 128
    %93 = vxpose.xlu0.b32.cont [13/16] 0.0, 128
    %94 = vxpose.xlu0.b32.cont [14/16] 0.0, 128
    %95 = vxpose.xlu0.b32.cont [15/16] 0.0, 128
    %96 = vxpose.xlu0.b32.end [16/16] 0.0, 128
    %v97 = vpop.trf.xlu0
    %v98 = vpop.trf.xlu0
    %v99 = vpop.trf.xlu0
    %v100 = vpop.trf.xlu0
    %v101 = vpop.trf.xlu0
    %v102 = vpop.trf.xlu0
    %v103 = vpop.trf.xlu0
    %v104 = vpop.trf.xlu0
    %v105 = vpop.trf.xlu0
    %v106 = vpop.trf.xlu0
    %v107 = vpop.trf.xlu0
    %v108 = vpop.trf.xlu0
    %v109 = vpop.trf.xlu0
    %v110 = vpop.trf.xlu0
    %v111 = vpop.trf.xlu0
    %v112 = vpop.trf.xlu0
    %113 = vxpose.xlu0.b32.start [1/16] %v79, 128
    %114 = vxpose.xlu0.b32.cont [2/16] %v80, 128
    %115 = vxpose.xlu0.b32.cont [3/16] 0.0, 128
    %116 = vxpose.xlu0.b32.cont [4/16] 0.0, 128
    %117 = vxpose.xlu0.b32.cont [5/16] 0.0, 128
    %118 = vxpose.xlu0.b32.cont [6/16] 0.0, 128
    %119 = vxpose.xlu0.b32.cont [7/16] 0.0, 128
    %120 = vxpose.xlu0.b32.cont [8/16] 0.0, 128
    %121 = vxpose.xlu0.b32.cont [9/16] 0.0, 128
    %122 = vxpose.xlu0.b32.cont [10/16] 0.0, 128
    %123 = vxpose.xlu0.b32.cont [11/16] 0.0, 128
    %124 = vxpose.xlu0.b32.cont [12/16] 0.0, 128
    %125 = vxpose.xlu0.b32.cont [13/16] 0.0, 128
    %126 = vxpose.xlu0.b32.cont [14/16] 0.0, 128
    %127 = vxpose.xlu0.b32.cont [15/16] 0.0, 128
    %128 = vxpose.xlu0.b32.end [16/16] 0.0, 128
    %v129 = vpop.trf.xlu0
    %v130 = vpop.trf.xlu0
    %v131 = vpop.trf.xlu0
    %v132 = vpop.trf.xlu0
    %v133 = vpop.trf.xlu0
    %v134 = vpop.trf.xlu0
    %v135 = vpop.trf.xlu0
    %v136 = vpop.trf.xlu0
    %v137 = vpop.trf.xlu0
    %v138 = vpop.trf.xlu0
    %v139 = vpop.trf.xlu0
    %v140 = vpop.trf.xlu0
    %v141 = vpop.trf.xlu0
    %v142 = vpop.trf.xlu0
    %v143 = vpop.trf.xlu0
    %v144 = vpop.trf.xlu0
    %v145 = vpack.c.bf16 %v97, %v97
    %v146 = vpack.c.bf16 %v129, %v129
    %v147 = vld [vmem:[%s0] sm:$0xf]
    %v148 = vld [vmem:[%s0 + $0x4] sm:$0xf]
    %v149 = vld [vmem:[%s0 + $0x8] sm:$0xf]
    %v150 = vld [vmem:[%s0 + $0xc] sm:$0xf]
    %v151 = vld [vmem:[%s1] sm:$0xf]
    %v152 = vld [vmem:[%s1 + $0x4] sm:$0xf]
    %v153 = vld [vmem:[%s1 + $0x8] sm:$0xf]
    %v154 = vld [vmem:[%s1 + $0xc] sm:$0xf]
    %v155 = vld [vmem:[#allocation2] sm:$0xff]
    %v156 = vld [vmem:[#allocation2 + $0x8] sm:$0xff]
    %v159 = vunpack.c.l.b16 %v147
    %v160 = vunpack.c.l.b16 %v148
    %v161 = vpack.c.b16 %v160, %v159
    %vm163 = vcmask 130048
    %v165 = vsel %vm163, %v145, 0
    %167 = vmatprep.subr.bf16.mxu0 0
    %168 = vmatpush1.bf16.msra.mxu0 %v161
    %169 = vmatprep.subr.bf16.mxu0 0
    %170 = vmatpush1.bf16.msra.mxu0 0
    %171 = vmatprep.subr.bf16.mxu0 0
    %172 = vmatpush1.bf16.msra.mxu0 0
    %173 = vmatprep.subr.bf16.mxu0 0
    %174 = vmatpush1.bf16.msra.mxu0 0
    %175 = vmatprep.subr.bf16.mxu0 0
    %176 = vmatpush1.bf16.msra.mxu0 0
    %177 = vmatprep.subr.bf16.mxu0 0
    %178 = vmatpush1.bf16.msra.mxu0 0
    %179 = vmatprep.subr.bf16.mxu0 0
    %180 = vmatpush1.bf16.msra.mxu0 0
    %181 = vmatprep.subr.bf16.mxu0 0
    %182 = vmatpush1.bf16.msra.mxu0 0
    %183 = vmatprep.subr.bf16.mxu0 0
    %184 = vmatpush1.bf16.msra.mxu0 0
    %185 = vmatprep.subr.bf16.mxu0 0
    %186 = vmatpush1.bf16.msra.mxu0 0
    %187 = vmatprep.subr.bf16.mxu0 0
    %188 = vmatpush1.bf16.msra.mxu0 0
    %189 = vmatprep.subr.bf16.mxu0 0
    %190 = vmatpush1.bf16.msra.mxu0 0
    %191 = vmatprep.subr.bf16.mxu0 0
    %192 = vmatpush1.bf16.msra.mxu0 0
    %193 = vmatprep.subr.bf16.mxu0 0
    %194 = vmatpush1.bf16.msra.mxu0 0
    %195 = vmatprep.subr.bf16.mxu0 0
    %196 = vmatpush1.bf16.msra.mxu0 0
    %197 = vmatprep.subr.bf16.mxu0 0
    %198 = vmatpush1.bf16.msra.mxu0 0
    %199 = vmatprep.mubr.bf16.mxu0 0
    %200 = vmatmul.mubr.bf16.gmra.mrb[0].mxu0 %v165
    %v201 = vpop.f32.mrb[0].mxu0
    %v202 = vadd.f32 0.0, %v201
    %v203 = vpop.f32.mrb[0].mxu0
    %v204 = vpop.f32.mrb[0].mxu0
    %v205 = vpop.f32.mrb[0].mxu0
    %206 = vdwg.mxu0
    %v209 = vunpack.c.l.b16 %v149
    %v210 = vunpack.c.l.b16 %v150
    %v211 = vpack.c.b16 %v210, %v209
    %v214 = vsel %vm163, %v146, 0
    %216 = vmatprep.subr.bf16.mxu0 0
    %217 = vmatpush1.bf16.msra.mxu0 %v211
    %218 = vmatprep.subr.bf16.mxu0 0
    %219 = vmatpush1.bf16.msra.mxu0 0
    %220 = vmatprep.subr.bf16.mxu0 0
    %221 = vmatpush1.bf16.msra.mxu0 0
    %222 = vmatprep.subr.bf16.mxu0 0
    %223 = vmatpush1.bf16.msra.mxu0 0
    %224 = vmatprep.subr.bf16.mxu0 0
    %225 = vmatpush1.bf16.msra.mxu0 0
    %226 = vmatprep.subr.bf16.mxu0 0
    %227 = vmatpush1.bf16.msra.mxu0 0
    %228 = vmatprep.subr.bf16.mxu0 0
    %229 = vmatpush1.bf16.msra.mxu0 0
    %230 = vmatprep.subr.bf16.mxu0 0
    %231 = vmatpush1.bf16.msra.mxu0 0
    %232 = vmatprep.subr.bf16.mxu0 0
    %233 = vmatpush1.bf16.msra.mxu0 0
    %234 = vmatprep.subr.bf16.mxu0 0
    %235 = vmatpush1.bf16.msra.mxu0 0
    %236 = vmatprep.subr.bf16.mxu0 0
    %237 = vmatpush1.bf16.msra.mxu0 0
    %238 = vmatprep.subr.bf16.mxu0 0
    %239 = vmatpush1.bf16.msra.mxu0 0
    %240 = vmatprep.subr.bf16.mxu0 0
    %241 = vmatpush1.bf16.msra.mxu0 0
    %242 = vmatprep.subr.bf16.mxu0 0
    %243 = vmatpush1.bf16.msra.mxu0 0
    %244 = vmatprep.subr.bf16.mxu0 0
    %245 = vmatpush1.bf16.msra.mxu0 0
    %246 = vmatprep.subr.bf16.mxu0 0
    %247 = vmatpush1.bf16.msra.mxu0 0
    %248 = vmatprep.mubr.bf16.mxu0 0
    %249 = vmatmul.mubr.bf16.gmra.mrb[0].mxu0 %v214
    %v250 = vpop.f32.mrb[0].mxu0
    %v251 = vadd.f32 0.0, %v250
    %v252 = vpop.f32.mrb[0].mxu0
    %v253 = vpop.f32.mrb[0].mxu0
    %v254 = vpop.f32.mrb[0].mxu0
    %255 = vdwg.mxu0
    %v256 = vadd.f32 %v155, %v202
    %v257 = vadd.f32 %v156, %v251
    %vm258 = vcmask 261120
    %259 = vst.msk [vmem:[#allocation2] sm:$0xff] %vm258, %v256
    %260 = vst.msk [vmem:[#allocation2 + $0x8] sm:$0xff] %vm258, %v257
    %v261 = vld [vmem:[#allocation3] sm:$0xff]
    %v262 = vld [vmem:[#allocation3 + $0x8] sm:$0xff]
    %v265 = vunpack.c.l.b16 %v151
    %v266 = vunpack.c.l.b16 %v152
    %v267 = vpack.c.b16 %v266, %v265
    %269 = vmatprep.subr.bf16.mxu0 0
    %270 = vmatpush1.bf16.msra.mxu0 %v267
    %271 = vmatprep.subr.bf16.mxu0 0
    %272 = vmatpush1.bf16.msra.mxu0 0
    %273 = vmatprep.subr.bf16.mxu0 0
    %274 = vmatpush1.bf16.msra.mxu0 0
    %275 = vmatprep.subr.bf16.mxu0 0
    %276 = vmatpush1.bf16.msra.mxu0 0
    %277 = vmatprep.subr.bf16.mxu0 0
    %278 = vmatpush1.bf16.msra.mxu0 0
    %279 = vmatprep.subr.bf16.mxu0 0
    %280 = vmatpush1.bf16.msra.mxu0 0
    %281 = vmatprep.subr.bf16.mxu0 0
    %282 = vmatpush1.bf16.msra.mxu0 0
    %283 = vmatprep.subr.bf16.mxu0 0
    %284 = vmatpush1.bf16.msra.mxu0 0
    %285 = vmatprep.subr.bf16.mxu0 0
    %286 = vmatpush1.bf16.msra.mxu0 0
    %287 = vmatprep.subr.bf16.mxu0 0
    %288 = vmatpush1.bf16.msra.mxu0 0
    %289 = vmatprep.subr.bf16.mxu0 0
    %290 = vmatpush1.bf16.msra.mxu0 0
    %291 = vmatprep.subr.bf16.mxu0 0
    %292 = vmatpush1.bf16.msra.mxu0 0
    %293 = vmatprep.subr.bf16.mxu0 0
    %294 = vmatpush1.bf16.msra.mxu0 0
    %295 = vmatprep.subr.bf16.mxu0 0
    %296 = vmatpush1.bf16.msra.mxu0 0
    %297 = vmatprep.subr.bf16.mxu0 0
    %298 = vmatpush1.bf16.msra.mxu0 0
    %299 = vmatprep.subr.bf16.mxu0 0
    %300 = vmatpush1.bf16.msra.mxu0 0
    %301 = vmatprep.mubr.bf16.mxu0 0
    %302 = vmatmul.mubr.bf16.gmra.mrb[0].mxu0 %v165
    %v303 = vpop.f32.mrb[0].mxu0
    %v304 = vadd.f32 0.0, %v303
    %v305 = vpop.f32.mrb[0].mxu0
    %v306 = vpop.f32.mrb[0].mxu0
    %v307 = vpop.f32.mrb[0].mxu0
    %308 = vdwg.mxu0
    %v311 = vunpack.c.l.b16 %v153
    %v312 = vunpack.c.l.b16 %v154
    %v313 = vpack.c.b16 %v312, %v311
    %315 = vmatprep.subr.bf16.mxu0 0
    %316 = vmatpush1.bf16.msra.mxu0 %v313
    %317 = vmatprep.subr.bf16.mxu0 0
    %318 = vmatpush1.bf16.msra.mxu0 0
    %319 = vmatprep.subr.bf16.mxu0 0
    %320 = vmatpush1.bf16.msra.mxu0 0
    %321 = vmatprep.subr.bf16.mxu0 0
    %322 = vmatpush1.bf16.msra.mxu0 0
    %323 = vmatprep.subr.bf16.mxu0 0
    %324 = vmatpush1.bf16.msra.mxu0 0
    %325 = vmatprep.subr.bf16.mxu0 0
    %326 = vmatpush1.bf16.msra.mxu0 0
    %327 = vmatprep.subr.bf16.mxu0 0
    %328 = vmatpush1.bf16.msra.mxu0 0
    %329 = vmatprep.subr.bf16.mxu0 0
    %330 = vmatpush1.bf16.msra.mxu0 0
    %331 = vmatprep.subr.bf16.mxu0 0
    %332 = vmatpush1.bf16.msra.mxu0 0
    %333 = vmatprep.subr.bf16.mxu0 0
    %334 = vmatpush1.bf16.msra.mxu0 0
    %335 = vmatprep.subr.bf16.mxu0 0
    %336 = vmatpush1.bf16.msra.mxu0 0
    %337 = vmatprep.subr.bf16.mxu0 0
    %338 = vmatpush1.bf16.msra.mxu0 0
    %339 = vmatprep.subr.bf16.mxu0 0
    %340 = vmatpush1.bf16.msra.mxu0 0
    %341 = vmatprep.subr.bf16.mxu0 0
    %342 = vmatpush1.bf16.msra.mxu0 0
    %343 = vmatprep.subr.bf16.mxu0 0
    %344 = vmatpush1.bf16.msra.mxu0 0
    %345 = vmatprep.subr.bf16.mxu0 0
    %346 = vmatpush1.bf16.msra.mxu0 0
    %347 = vmatprep.mubr.bf16.mxu0 0
    %348 = vmatmul.mubr.bf16.gmra.mrb[0].mxu0 %v214
    %v349 = vpop.f32.mrb[0].mxu0
    %v350 = vadd.f32 0.0, %v349
    %v351 = vpop.f32.mrb[0].mxu0
    %v352 = vpop.f32.mrb[0].mxu0
    %v353 = vpop.f32.mrb[0].mxu0
    %354 = vdwg.mxu0
    %v355 = vadd.f32 %v261, %v304
    %v356 = vadd.f32 %v262, %v350
    %357 = vst.msk [vmem:[#allocation3] sm:$0xff] %vm163, %v355
    %358 = vst.msk [vmem:[#allocation3 + $0x8] sm:$0xff] %vm163, %v356
    // Predicated region
    $region22: #{tpu_custom_call.1} parent=1 // pred_check
      %p359 = pneg %p22
    $region23: #{tpu_custom_call.1} parent=1 // pred_check_branch
      %361 = sbr.rel (%p359) target = $region25
    $region24: #{tpu_custom_call.1} parent=1 // pred_region
      %v362 = vld [vmem:[%s3] sm:$0xff]
      %v363 = vld [vmem:[%s3 + $0x8] sm:$0xff]
      %v364 = vld [vmem:[%s3 + $0x10] sm:$0xff]
      %v365 = vld [vmem:[%s3 + $0x18] sm:$0xff]
      %v366 = vsel %vm36, %v362, -inf
      %367 = vmax.xlane.f32.xlu0 %v366
      %v368 = vpop.xlane.xlu0 %367
      %v369 = vsel %vm36, %v363, -inf
      %370 = vmax.xlane.f32.xlu0 %v369
      %v371 = vpop.xlane.xlu0 %370
      %v372 = vsel %vm36, %v364, -inf
      %373 = vmax.xlane.f32.xlu0 %v372
      %v374 = vpop.xlane.xlu0 %373
      %v375 = vsel %vm36, %v365, -inf
      %376 = vmax.xlane.f32.xlu0 %v375
      %v377 = vpop.xlane.xlu0 %376
      %v378 = vsub.f32 %v362, %v368
      %v379 = vsub.f32 %v363, %v371
      %v380 = vsub.f32 %v364, %v374
      %v381 = vsub.f32 %v365, %v377
      %v382 = vmul.f32 %v378, 1.442695
      %v383 = vpow.pop %v382
      %v384 = vmul.f32 %v379, 1.442695
      %v385 = vpow.pop %v384
      %v386 = vmul.f32 %v380, 1.442695
      %v387 = vpow.pop %v386
      %v388 = vmul.f32 %v381, 1.442695
      %v389 = vpow.pop %v388
      %v390 = vsel %vm36, %v383, 0.0
      %391 = vadd.xlane.f32.xlu0 %v390
      %v392 = vpop.xlane.xlu0 %391
      %v393 = vsel %vm36, %v385, 0.0
      %394 = vadd.xlane.f32.xlu0 %v393
      %v395 = vpop.xlane.xlu0 %394
      %v396 = vsel %vm36, %v387, 0.0
      %397 = vadd.xlane.f32.xlu0 %v396
      %v398 = vpop.xlane.xlu0 %397
      %v399 = vsel %vm36, %v389, 0.0
      %400 = vadd.xlane.f32.xlu0 %v399
      %v401 = vpop.xlane.xlu0 %400
      %v402 = vrcp.pop %v392
      %v403 = vrcp.pop %v395
      %v404 = vrcp.pop %v398
      %v405 = vrcp.pop %v401
      %v406 = vmul.f32 %v383, %v402
      %v407 = vmul.f32 %v385, %v403
      %v408 = vmul.f32 %v387, %v404
      %v409 = vmul.f32 %v389, %v405
      %v410 = vld [vmem:[#allocation2] sm:$0xff]
      %v411 = vld [vmem:[#allocation2 + $0x8] sm:$0xff]
      %412 = vst.msk [vmem:[#allocation4] sm:$0xff] %vm258, %v410
      %413 = vst.msk [vmem:[#allocation4 + $0x8] sm:$0xff] %vm258, %v411
      %v414 = vld [vmem:[#allocation3] sm:$0xff]
      %v415 = vld [vmem:[#allocation3 + $0x8] sm:$0xff]
      %v417 = vsel %vm163, %v414, 0
      %419 = vmatprep.subr.mxu0 0.0
      %420 = vmatpush1.msra.mxu0 %v406
      %421 = vmatprep.subr.mxu0 0.0
      %422 = vmatpush1.msra.mxu0 %v407
      %423 = vmatprep.subr.mxu0 0.0
      %424 = vmatpush1.msra.mxu0 0.0
      %425 = vmatprep.subr.mxu0 0.0
      %426 = vmatpush1.msra.mxu0 0.0
      %427 = vmatprep.subr.mxu0 0.0
      %428 = vmatpush1.msra.mxu0 0.0
      %429 = vmatprep.subr.mxu0 0.0
      %430 = vmatpush1.msra.mxu0 0.0
      %431 = vmatprep.subr.mxu0 0.0
      %432 = vmatpush1.msra.mxu0 0.0
      %433 = vmatprep.subr.mxu0 0.0
      %434 = vmatpush1.msra.mxu0 0.0
      %435 = vmatprep.subr.mxu0 0.0
      %436 = vmatpush1.msra.mxu0 0.0
      %437 = vmatprep.subr.mxu0 0.0
      %438 = vmatpush1.msra.mxu0 0.0
      %439 = vmatprep.subr.mxu0 0.0
      %440 = vmatpush1.msra.mxu0 0.0
      %441 = vmatprep.subr.mxu0 0.0
      %442 = vmatpush1.msra.mxu0 0.0
      %443 = vmatprep.subr.mxu0 0.0
      %444 = vmatpush1.msra.mxu0 0.0
      %445 = vmatprep.subr.mxu0 0.0
      %446 = vmatpush1.msra.mxu0 0.0
      %447 = vmatprep.subr.mxu0 0.0
      %448 = vmatpush1.msra.mxu0 0.0
      %449 = vmatprep.subr.mxu0 0.0
      %450 = vmatpush1.msra.mxu0 0.0
      %451 = vmatprep.subr.mxu0 0.0
      %452 = vmatpush1.msra.mxu0 0.0
      %453 = vmatprep.subr.mxu0 0.0
      %454 = vmatpush1.msra.mxu0 0.0
      %455 = vmatprep.subr.mxu0 0.0
      %456 = vmatpush1.msra.mxu0 0.0
      %457 = vmatprep.subr.mxu0 0.0
      %458 = vmatpush1.msra.mxu0 0.0
      %459 = vmatprep.subr.mxu0 0.0
      %460 = vmatpush1.msra.mxu0 0.0
      %461 = vmatprep.subr.mxu0 0.0
      %462 = vmatpush1.msra.mxu0 0.0
      %463 = vmatprep.subr.mxu0 0.0
      %464 = vmatpush1.msra.mxu0 0.0
      %465 = vmatprep.subr.mxu0 0.0
      %466 = vmatpush1.msra.mxu0 0.0
      %467 = vmatprep.subr.mxu0 0.0
      %468 = vmatpush1.msra.mxu0 0.0
      %469 = vmatprep.subr.mxu0 0.0
      %470 = vmatpush1.msra.mxu0 0.0
      %471 = vmatprep.subr.mxu0 0.0
      %472 = vmatpush1.msra.mxu0 0.0
      %473 = vmatprep.subr.mxu0 0.0
      %474 = vmatpush1.msra.mxu0 0.0
      %475 = vmatprep.subr.mxu0 0.0
      %476 = vmatpush1.msra.mxu0 0.0
      %477 = vmatprep.subr.mxu0 0.0
      %478 = vmatpush1.msra.mxu0 0.0
      %479 = vmatprep.subr.mxu0 0.0
      %480 = vmatpush1.msra.mxu0 0.0
      %481 = vmatprep.subr.mxu0 0.0
      %482 = vmatpush1.msra.mxu0 0.0
      %483 = vmatprep.mubr.f32.mxu0 0.0
      %484 = vmatmul.mubr.f32.gmra.mrb[0].mxu0 %v417
      %v485 = vpop.f32.mrb[0].mxu0
      %v486 = vadd.f32 0.0, %v485
      %v487 = vpop.f32.mrb[0].mxu0
      %488 = vdwg.mxu0
      %v490 = vsel %vm163, %v415, 0
      %492 = vmatprep.subr.mxu0 0.0
      %493 = vmatpush1.msra.mxu0 %v408
      %494 = vmatprep.subr.mxu0 0.0
      %495 = vmatpush1.msra.mxu0 %v409
      %496 = vmatprep.subr.mxu0 0.0
      %497 = vmatpush1.msra.mxu0 0.0
      %498 = vmatprep.subr.mxu0 0.0
      %499 = vmatpush1.msra.mxu0 0.0
      %500 = vmatprep.subr.mxu0 0.0
      %501 = vmatpush1.msra.mxu0 0.0
      %502 = vmatprep.subr.mxu0 0.0
      %503 = vmatpush1.msra.mxu0 0.0
      %504 = vmatprep.subr.mxu0 0.0
      %505 = vmatpush1.msra.mxu0 0.0
      %506 = vmatprep.subr.mxu0 0.0
      %507 = vmatpush1.msra.mxu0 0.0
      %508 = vmatprep.subr.mxu0 0.0
      %509 = vmatpush1.msra.mxu0 0.0
      %510 = vmatprep.subr.mxu0 0.0
      %511 = vmatpush1.msra.mxu0 0.0
      %512 = vmatprep.subr.mxu0 0.0
      %513 = vmatpush1.msra.mxu0 0.0
      %514 = vmatprep.subr.mxu0 0.0
      %515 = vmatpush1.msra.mxu0 0.0
      %516 = vmatprep.subr.mxu0 0.0
      %517 = vmatpush1.msra.mxu0 0.0
      %518 = vmatprep.subr.mxu0 0.0
      %519 = vmatpush1.msra.mxu0 0.0
      %520 = vmatprep.subr.mxu0 0.0
      %521 = vmatpush1.msra.mxu0 0.0
      %522 = vmatprep.subr.mxu0 0.0
      %523 = vmatpush1.msra.mxu0 0.0
      %524 = vmatprep.subr.mxu0 0.0
      %525 = vmatpush1.msra.mxu0 0.0
      %526 = vmatprep.subr.mxu0 0.0
      %527 = vmatpush1.msra.mxu0 0.0
      %528 = vmatprep.subr.mxu0 0.0
      %529 = vmatpush1.msra.mxu0 0.0
      %530 = vmatprep.subr.mxu0 0.0
      %531 = vmatpush1.msra.mxu0 0.0
      %532 = vmatprep.subr.mxu0 0.0
      %533 = vmatpush1.msra.mxu0 0.0
      %534 = vmatprep.subr.mxu0 0.0
      %535 = vmatpush1.msra.mxu0 0.0
      %536 = vmatprep.subr.mxu0 0.0
      %537 = vmatpush1.msra.mxu0 0.0
      %538 = vmatprep.subr.mxu0 0.0
      %539 = vmatpush1.msra.mxu0 0.0
      %540 = vmatprep.subr.mxu0 0.0
      %541 = vmatpush1.msra.mxu0 0.0
      %542 = vmatprep.subr.mxu0 0.0
      %543 = vmatpush1.msra.mxu0 0.0
      %544 = vmatprep.subr.mxu0 0.0
      %545 = vmatpush1.msra.mxu0 0.0
      %546 = vmatprep.subr.mxu0 0.0
      %547 = vmatpush1.msra.mxu0 0.0
      %548 = vmatprep.subr.mxu0 0.0
      %549 = vmatpush1.msra.mxu0 0.0
      %550 = vmatprep.subr.mxu0 0.0
      %551 = vmatpush1.msra.mxu0 0.0
      %552 = vmatprep.subr.mxu0 0.0
      %553 = vmatpush1.msra.mxu0 0.0
      %554 = vmatprep.subr.mxu0 0.0
      %555 = vmatpush1.msra.mxu0 0.0
      %556 = vmatprep.mubr.f32.mxu0 0.0
      %557 = vmatmul.mubr.f32.gmra.mrb[0].mxu0 %v490
      %v558 = vpop.f32.mrb[0].mxu0
      %v559 = vadd.f32 0.0, %v558
      %v560 = vpop.f32.mrb[0].mxu0
      %561 = vdwg.mxu0
      %562 = vst.msk [vmem:[#allocation6] sm:$0xff] %vm36, %v486
      %563 = vst.msk [vmem:[#allocation6 + $0x8] sm:$0xff] %vm36, %v559
    $region25: #{tpu_custom_call.1} parent=1 // pred_fallthru
      _
    // Predicated region
    $region26: #{tpu_custom_call.1} parent=1 // pred_check
      _
    $region27: #{tpu_custom_call.1} parent=1 // pred_check_branch
      %565 = sbr.rel (0) target = $region29
    $region28: #{tpu_custom_call.1} parent=1 // pred_region
      %s567 = ssub.s32 256, 256
      %568 = vsyncadd [#allocation5], %s567
      %s569 = sshll.u32 [#allocation4], 4
      %s570 = int_to_ptr.vmem [resolvable:$true] %s569
      %575 = dma.vmem_to_hbm [thread:$0]  %s570, 256, %s4, [#allocation5], 128, 128, 8
    $region29: #{tpu_custom_call.1} parent=1 // pred_fallthru
      _
    // Predicated region
    $region30: #{tpu_custom_call.1} parent=1 // pred_check
      _
    $region31: #{tpu_custom_call.1} parent=1 // pred_check_branch
      %577 = sbr.rel (0) target = $region33
    $region32: #{tpu_custom_call.1} parent=1 // pred_region
      %s579 = ssub.s32 256, 256
      %580 = vsyncadd [#allocation7], %s579
      %s581 = sshll.u32 [#allocation6], 4
      %s582 = int_to_ptr.vmem [resolvable:$true] %s581
      %587 = dma.vmem_to_hbm [thread:$0]  %s582, 256, %s5, [#allocation7], 128, 128, 8
    $region33: #{tpu_custom_call.1} parent=1 // pred_fallthru
      _
    // Predicated region
    $region34: #{tpu_custom_call.1} parent=1 // pred_check
      _
    $region35: #{tpu_custom_call.1} parent=1 // pred_check_branch
      %589 = sbr.rel (0) target = $region37
    $region36: #{tpu_custom_call.1} parent=1 // pred_region
      %590 = dma.done [#allocation5], 256
    $region37: #{tpu_custom_call.1} parent=1 // pred_fallthru
      _
    // Predicated region
    $region38: #{tpu_custom_call.1} parent=1 // pred_check
      _
    $region39: #{tpu_custom_call.1} parent=1 // pred_check_branch
      %592 = sbr.rel (0) target = $region41
    $region40: #{tpu_custom_call.1} parent=1 // pred_region
      %593 = dma.done [#allocation7], 256
    $region41: #{tpu_custom_call.1} parent=1 // pred_fallthru
      _
    %594 = vsyncpa [#allocation5], 1
    %595 = vsyncpa [#allocation7], 1

</llo_original>
